<compile_context>
chip_gen: v6e
topology: v6e:2x2x1
jax: 0.10.0
libtpu: 0.0.40
codegen_flags: <defaults>
</compile_context>

<pallas_src>
import functools

import jax
import jax.numpy as jnp
from jax.experimental import pallas as pl
from jax.experimental.pallas import tpu as pltpu


# ---------------------------------------------------------------------------
# Kernels
# ---------------------------------------------------------------------------

def _relu_mask_kernel(x_ref, m_ref, o_ref, *, compute_fp32: bool):
    x = x_ref[...]            # (1, TR, Sk)
    m = m_ref[...]            # (1, 1, Sk) — broadcasts over the row axis
    if compute_fp32:
        x = x.astype(jnp.float32)   # cast only x; m promotes exactly in the add
    y = jnp.maximum(x + m, 0)
    o_ref[...] = y.astype(o_ref.dtype)


def _relu_kernel(x_ref, o_ref, *, compute_fp32: bool):
    x = x_ref[...]            # (TR, Sk)
    if compute_fp32:
        x = x.astype(jnp.float32)
    o_ref[...] = jnp.maximum(x, 0).astype(o_ref.dtype)


# ---------------------------------------------------------------------------
# Tiling heuristic
# ---------------------------------------------------------------------------

def _choose_row_tile(total_rows: int, ncols: int, itemsize: int,
                     target_bytes: int) -> int:
    """Pick a row-tile TR so TR * ncols * itemsize ~= target_bytes.

    TR is either the full row extent (always legal) or a multiple of the
    dtype's sublane packing (8 for f32, 16 for bf16, 32 for 8-bit), so the
    block satisfies the (8, 128) tiling constraint without padding.
    """
    row_bytes = max(1, ncols * itemsize)
    mult = max(8, 32 // max(1, itemsize))
    tr = target_bytes // row_bytes
    if tr >= total_rows:
        return total_rows          # one full slab per (grid point) — always legal
    tr = max(mult, (tr // mult) * mult)
    return min(tr, total_rows)


# ---------------------------------------------------------------------------
# Public wrapper (TorchReLU.forward equivalent)
# ---------------------------------------------------------------------------

def torch_relu(inputs, attention_mask=None, *, seq_op_in_fp32: bool = False,
               donate_inputs: bool = False,
               row_tile_target_bytes: int = 2 << 20):
    """Pallas equivalent of TorchReLU.forward.

    inputs:          [B, H, Sq, Sk]
    attention_mask:  broadcastable to [B, 1, 1, Sk], or None
    Returns an array with the same shape and dtype as `inputs`.
    """
    B, H, Sq, Sk = inputs.shape
    orig_shape = inputs.shape
    dtype = inputs.dtype
    itemsize = jnp.dtype(dtype).itemsize
    io_alias = {0: 0} if donate_inputs else {}

    if attention_mask is None:
        # No mask: fully collapse to a 2-D (rows, Sk) stream and tile rows.
        total_rows = B * H * Sq
        x2 = inputs.reshape(total_rows, Sk)
        tr = _choose_row_tile(total_rows, Sk, itemsize, row_tile_target_bytes)
        grid = (pl.cdiv(total_rows, tr),)

        x_spec = pl.BlockSpec((tr, Sk), lambda r: (r, 0))
        o_spec = pl.BlockSpec((tr, Sk), lambda r: (r, 0))
        kernel = functools.partial(_relu_kernel, compute_fp32=seq_op_in_fp32)

        out = pl.pallas_call(
            kernel,
            out_shape=jax.ShapeDtypeStruct((total_rows, Sk), dtype),
            grid_spec=pltpu.PrefetchScalarGridSpec(
                num_scalar_prefetch=0,
                grid=grid,
                in_specs=[x_spec],
                out_specs=o_spec,
            ),
            compiler_params=pltpu.CompilerParams(
                dimension_semantics=("parallel",)),
            input_output_aliases=io_alias,
        )(x2)
        return out.reshape(orig_shape)

    # With mask: collapse H into the row axis (mask is constant over H and Sq),
    # keep B as its own grid axis so the mask block index stays (b, 0, 0).
    rows = H * Sq
    x3 = inputs.reshape(B, rows, Sk)
    m3 = jnp.broadcast_to(attention_mask, (B, 1, 1, Sk)).reshape(B, 1, Sk)
    tr = _choose_row_tile(rows, Sk, itemsize, row_tile_target_bytes)
    grid = (B, pl.cdiv(rows, tr))

    x_spec = pl.BlockSpec((1, tr, Sk), lambda b, r: (b, r, 0))
    m_spec = pl.BlockSpec((1, 1, Sk), lambda b, r: (b, 0, 0))
    o_spec = pl.BlockSpec((1, tr, Sk), lambda b, r: (b, r, 0))
    kernel = functools.partial(_relu_mask_kernel, compute_fp32=seq_op_in_fp32)

    out = pl.pallas_call(
        kernel,
        out_shape=jax.ShapeDtypeStruct((B, rows, Sk), dtype),
        grid_spec=pltpu.PrefetchScalarGridSpec(
            num_scalar_prefetch=0,
            grid=grid,
            in_specs=[x_spec, m_spec],
            out_specs=o_spec,
        ),
        compiler_params=pltpu.CompilerParams(
            dimension_semantics=("parallel", "parallel")),
        input_output_aliases=io_alias,
    )(x3, m3)
    return out.reshape(orig_shape)


# ---------------------------------------------------------------------------
# Pure-JAX reference (mirrors the PyTorch forward)
# ---------------------------------------------------------------------------

def _reference(inputs, attention_mask=None, *, seq_op_in_fp32: bool = False):
    input_dtype = inputs.dtype
    x = inputs
    m = attention_mask
    if seq_op_in_fp32:
        x = x.astype(jnp.float32)
        if m is not None:
            m = m.astype(jnp.float32)
    if m is not None:
        x = x + m
    return jnp.maximum(x, 0).astype(input_dtype)


if __name__ == "__main__":
    key = jax.random.PRNGKey(0)
    k1, k2, k3, k4 = jax.random.split(key, 4)

    # ---- Case 1: small shapes, with mask, seq_op_in_fp32=True (bf16) ----
    B, H, S = 2, 4, 8
    x = jax.random.normal(k1, (B, H, S, S), dtype=jnp.float32).astype(jnp.bfloat16)
    mask_bits = jax.random.bernoulli(k2, p=0.8, shape=(B, 1, 1, S))
    attn_mask = jnp.where(mask_bits, 0.0, -10000.0).astype(jnp.bfloat16)

    out1 = torch_relu(x, attn_mask, seq_op_in_fp32=True)
    jax.block_until_ready(out1)
    ref1 = _reference(x, attn_mask, seq_op_in_fp32=True)
    assert out1.dtype == x.dtype and out1.shape == x.shape
    assert jnp.allclose(out1.astype(jnp.float32), ref1.astype(jnp.float32))

    # ---- Case 2: small shapes, no mask, seq_op_in_fp32=False ----
    out2 = torch_relu(x, None, seq_op_in_fp32=False)
    jax.block_until_ready(out2)
    ref2 = _reference(x, None, seq_op_in_fp32=False)
    assert jnp.allclose(out2.astype(jnp.float32), ref2.astype(jnp.float32))

    # ---- Case 3: exercise the row-tiled path (tr < H*Sq) with a tiny target ----
    B3, H3, S3 = 2, 2, 64
    x3 = jax.random.normal(k3, (B3, H3, S3, S3), dtype=jnp.float32).astype(jnp.bfloat16)
    m_bits3 = jax.random.bernoulli(k4, p=0.7, shape=(B3, 1, 1, S3))
    m3 = jnp.where(m_bits3, 0.0, -10000.0).astype(jnp.bfloat16)

    out3 = torch_relu(x3, m3, seq_op_in_fp32=True, row_tile_target_bytes=4096)
    jax.block_until_ready(out3)
    ref3 = _reference(x3, m3, seq_op_in_fp32=True)
    assert jnp.allclose(out3.astype(jnp.float32), ref3.astype(jnp.float32))

    # ---- Case 4: tiled, no mask, non-divisible row count (partial last block) ----
    B4, H4, Sq4, Sk4 = 2, 3, 40, 64   # rows = 240, tr = 32 -> 8 blocks, last partial
    x4 = jax.random.normal(k1, (B4, H4, Sq4, Sk4), dtype=jnp.float32)
    out4 = torch_relu(x4, None, seq_op_in_fp32=False, row_tile_target_bytes=8192)
    jax.block_until_ready(out4)
    ref4 = _reference(x4, None, seq_op_in_fp32=False)
    assert jnp.allclose(out4, ref4)

    print("KERNEL_OK")
</pallas_src>

<mosaic_0001>
module attributes {stable_mosaic.version = 11 : i64} {
  func.func @_relu_mask_kernel(%arg0: i32, %arg1: i32, %arg2: memref<1x32x8xbf16, #tpu.memory_space<vmem>>, %arg3: memref<1x1x8xbf16, #tpu.memory_space<vmem>>, %arg4: memref<1x32x8xbf16, #tpu.memory_space<vmem>>) attributes {dimension_semantics = [#tpu.dimension_semantics<parallel>, #tpu.dimension_semantics<parallel>], iteration_bounds = array<i64: 2, 1>, scalar_prefetch = 0 : i64, scratch_operands = 0 : i64, tpu.core_type = #tpu.core_type<tc>, window_params = [{transform_indices = @transform_0, window_bounds = array<i64: 1, 32, 8>}, {transform_indices = @transform_1, window_bounds = array<i64: 1, 1, 8>}, {transform_indices = @transform_2, window_bounds = array<i64: 1, 32, 8>}]} {
    %c0 = arith.constant 0 : index
    %c0_0 = arith.constant 0 : index
    %c0_1 = arith.constant 0 : index
    %0 = vector.load %arg2[%c0, %c0_0, %c0_1] : memref<1x32x8xbf16, #tpu.memory_space<vmem>>, vector<1x32x8xbf16>
    %c0_2 = arith.constant 0 : index
    %c0_3 = arith.constant 0 : index
    %c0_4 = arith.constant 0 : index
    %1 = vector.load %arg3[%c0_2, %c0_3, %c0_4] : memref<1x1x8xbf16, #tpu.memory_space<vmem>>, vector<1x1x8xbf16>
    %2 = arith.extf %0 : vector<1x32x8xbf16> to vector<1x32x8xf32>
    %3 = arith.extf %1 : vector<1x1x8xbf16> to vector<1x1x8xf32>
    %4 = vector.broadcast %3 : vector<1x1x8xf32> to vector<1x32x8xf32>
    %5 = arith.addf %2, %4 : vector<1x32x8xf32>
    %cst = arith.constant 0.000000e+00 : f32
    %6 = vector.broadcast %cst : f32 to vector<1x32x8xf32>
    %7 = arith.maximumf %5, %6 : vector<1x32x8xf32>
    %8 = arith.truncf %7 : vector<1x32x8xf32> to vector<1x32x8xbf16>
    %c0_5 = arith.constant 0 : index
    %c0_6 = arith.constant 0 : index
    %c0_7 = arith.constant 0 : index
    %9 = vector.load %arg4[%c0_5, %c0_6, %c0_7] : memref<1x32x8xbf16, #tpu.memory_space<vmem>>, vector<1x32x8xbf16>
    tpu.vector_store %arg4[%c0_5, %c0_6, %c0_7], %8 {strides = array<i32>} : memref<1x32x8xbf16, #tpu.memory_space<vmem>>, vector<1x32x8xbf16>,
    return
  }
  func.func @transform_0(%arg0: i32, %arg1: i32) -> (i32, i32, i32) {
    %c0_i32 = arith.constant 0 : i32
    %c0_i32_0 = arith.constant 0 : i32
    return %arg0, %arg1, %c0_i32 : i32, i32, i32
  }
  func.func @transform_1(%arg0: i32, %arg1: i32) -> (i32, i32, i32) {
    %c0_i32 = arith.constant 0 : i32
    %c0_i32_0 = arith.constant 0 : i32
    %c0_i32_1 = arith.constant 0 : i32
    return %arg0, %c0_i32, %c0_i32_0 : i32, i32, i32
  }
  func.func @transform_2(%arg0: i32, %arg1: i32) -> (i32, i32, i32) {
    %c0_i32 = arith.constant 0 : i32
    %c0_i32_0 = arith.constant 0 : i32
    return %arg0, %arg1, %c0_i32 : i32, i32, i32
  }
}

</mosaic_0001>

<llo_original>
// kernel: tpu_custom_call.1
$region0: #{tpu_custom_call.1}
  #allocation0 [shape = 'u32[]', space=smem, size = 0x4, offset = 0x4, fixed_abs, tag = 'smem constant byte address 0x4 - core index']
  #allocation1 [shape = 'u32[144,128]{1,0:T(1,128)}', space=vmem, size = 0x12000, scoped, tag = 'internal scratch']
  %s0 = inlined_call_operand.vmem [shape: bf16[2,32,8], index: 0, kind: input, shape index: {}]
  %s1 = inlined_call_operand.vmem [shape: bf16[2,1,8], index: 1, kind: input, shape index: {}]
  %s2 = inlined_call_operand.vmem [shape: bf16[2,32,8], index: 2, kind: output, shape index: {}]
  %s3 = sld [smem:[#allocation0]]
  $region41: #{tpu_custom_call.1} parent=0
    _
  %s5 = ssub.s32 1, %s3
  %s6 = scalar_select 0, %s5, %s3
  loop: start=0, step=1, limit=4
  $region2: #{tpu_custom_call.1} parent=0 // loop_pre_header
    _
  $region3: #{tpu_custom_call.1} parent=0 // loop_header
    %s8 = sphi 0, %s12
    %p9 = scmp.ge.s32.totalorder %s8, 4
    %s15 = sphi 0, %s27
    %s16 = sphi 0, %s23
    %s17 = sphi 0, %s15
    %s18 = sphi 0, %s16
    %s19 = sphi 0, %s17
    %s20 = sphi 0, %s18
    %s32 = sphi 0, %s34
    %s35 = sphi 0, %s32
    %s36 = sphi 0, %s35
    %s52 = sphi 0, %s36
    %s58 = sphi 0, %s60
    %s61 = sphi 0, %s58
    %s62 = sphi 0, %s61
    %s78 = sphi 0, %s62
    %s86 = sphi 0, %s88
    %s89 = sphi 0, %s86
    %s90 = sphi 0, %s89
    %s106 = sphi 0, %s90
  $region4: #{tpu_custom_call.1} parent=0 // loop_header_branch
    %11 = sbr.rel (%p9) target = $region8
  $region5: #{tpu_custom_call.1} parent=0 // loop_body
    %s13 = ssub.s32 %s8, 1
    %s14 = ssub.s32 %s8, 2
    %s21 = sadd.s32 1, %s16
    %p22 = scmp.ge.s32.totalorder %s21, 1
    %s23 = scalar_select %p22, 0, %s21
    %s24 = sadd.s32 1, %s15
    %s25 = scalar_select %p22, %s24, %s15
    %p26 = scmp.ge.s32.totalorder %s25, 2
    %s27 = scalar_select %p26, 0, %s25
    %s28 = ssub.s32 %s15, %s27
    %s29 = ssub.s32 %s16, %s23
    %s30 = sor.u32 %s28, %s29
    %p31 = scmp.eq.s32.totalorder %s30, 0
    %s33 = sadd.s32 %s32, 1
    %s34 = scalar_select %p31, %s32, %s33
    %p37 = pneg %p31
    %p38 = scmp.eq.s32.totalorder %s8, 1
    %p39 = por %p37, %p38
    %p40 = scmp.ne.s32.totalorder %s32, %s35
    %p41 = scmp.eq.s32.totalorder %s8, 0
    %p42 = por %p40, %p41
    %p43 = scmp.ne.s32.totalorder %s32, %s35
    %p44 = scmp.eq.s32.totalorder %s13, 1
    %p45 = por %p43, %p44
    %p46 = scmp.ne.s32.totalorder %s35, %s36
    %p47 = scmp.eq.s32.totalorder %s13, 0
    %p48 = por %p46, %p47
    %p49 = scmp.ne.s32.totalorder %s35, %s36
    %p50 = scmp.eq.s32.totalorder %s14, 1
    %p51 = por %p49, %p50
    %p53 = scmp.ne.s32.totalorder %s36, %s52
    %p54 = scmp.eq.s32.totalorder %s14, 0
    %p55 = por %p53, %p54
    %s56 = ssub.s32 %s15, %s27
    %p57 = scmp.eq.s32.totalorder %s56, 0
    %s59 = sadd.s32 %s58, 1
    %s60 = scalar_select %p57, %s58, %s59
    %p63 = pneg %p57
    %p64 = scmp.eq.s32.totalorder %s8, 1
    %p65 = por %p63, %p64
    %p66 = scmp.ne.s32.totalorder %s58, %s61
    %p67 = scmp.eq.s32.totalorder %s8, 0
    %p68 = por %p66, %p67
    %p69 = scmp.ne.s32.totalorder %s58, %s61
    %p70 = scmp.eq.s32.totalorder %s13, 1
    %p71 = por %p69, %p70
    %p72 = scmp.ne.s32.totalorder %s61, %s62
    %p73 = scmp.eq.s32.totalorder %s13, 0
    %p74 = por %p72, %p73
    %p75 = scmp.ne.s32.totalorder %s61, %s62
    %p76 = scmp.eq.s32.totalorder %s14, 1
    %p77 = por %p75, %p76
    %p79 = scmp.ne.s32.totalorder %s62, %s78
    %p80 = scmp.eq.s32.totalorder %s14, 0
    %p81 = por %p79, %p80
    %s82 = ssub.s32 %s15, %s27
    %s83 = ssub.s32 %s16, %s23
    %s84 = sor.u32 %s82, %s83
    %p85 = scmp.eq.s32.totalorder %s84, 0
    %s87 = sadd.s32 %s86, 1
    %s88 = scalar_select %p85, %s86, %s87
    %p91 = pneg %p85
    %p92 = scmp.eq.s32.totalorder %s8, 1
    %p93 = por %p91, %p92
    %p94 = scmp.ne.s32.totalorder %s86, %s89
    %p95 = scmp.eq.s32.totalorder %s8, 0
    %p96 = por %p94, %p95
    %p97 = scmp.ne.s32.totalorder %s86, %s89
    %p98 = scmp.eq.s32.totalorder %s13, 1
    %p99 = por %p97, %p98
    %p100 = scmp.ne.s32.totalorder %s89, %s90
    %p101 = scmp.eq.s32.totalorder %s13, 0
    %p102 = por %p100, %p101
    %p103 = scmp.ne.s32.totalorder %s89, %s90
    %p104 = scmp.eq.s32.totalorder %s14, 1
    %p105 = por %p103, %p104
    %p107 = scmp.ne.s32.totalorder %s90, %s106
    %p108 = scmp.eq.s32.totalorder %s14, 0
    %p109 = por %p107, %p108
    %p110 = scmp.le.s32.totalorder 1, %s8
    %p111 = scmp.lt.s32.totalorder %s8, 3
    %p112 = pnand %p110, %p111
    %p113 = pneg %p112
    // Predicated region
    $region9: #{tpu_custom_call.1} parent=5 // pred_check
      _
    $region10: #{tpu_custom_call.1} parent=5 // pred_check_branch
      %115 = sbr.rel (%p112) target = $region12
    $region11: #{tpu_custom_call.1} parent=5 // pred_region
      %s116 = ssub.s32 %s8, 1
    $region12: #{tpu_custom_call.1} parent=5 // pred_fallthru
      _
    %p117 = scmp.lt.s32.totalorder %s8, 2
    // Predicated region
    $region13: #{tpu_custom_call.1} parent=5 // pred_check
      %p118 = pneg %p117
    $region14: #{tpu_custom_call.1} parent=5 // pred_check_branch
      %120 = sbr.rel (%p118) target = $region16
    $region15: #{tpu_custom_call.1} parent=5 // pred_region
      // Predicated region
      $region17: #{tpu_custom_call.1} parent=15 // pred_check
        %p121 = pneg %p42
      $region18: #{tpu_custom_call.1} parent=15 // pred_check_branch
        %123 = sbr.rel (%p121) target = $region20
      $region19: #{tpu_custom_call.1} parent=15 // pred_region
        %s124 = smul.u32 4, %s16
        %p125 = scmp.lt.s32.totalorder %s15, 1
        %s126 = scalar_select %p125, %s15, 1
        %p127 = scmp.lt.s32.totalorder %s124, 3
        %s128 = scalar_select %p127, %s124, 3
        %s129 = smul.addr %s126, 4
        %s130 = sadd.s32 %s128, %s129
        %s131 = smul.addr %s130, 4
        %s132 = scalar_lea.vmem %s0, %s131
        %s133 = smul.u32 4, %s16
      $region20: #{tpu_custom_call.1} parent=15 // pred_fallthru
        _
      // Predicated region
      $region21: #{tpu_custom_call.1} parent=15 // pred_check
        %p134 = pneg %p68
      $region22: #{tpu_custom_call.1} parent=15 // pred_check_branch
        %136 = sbr.rel (%p134) target = $region24
      $region23: #{tpu_custom_call.1} parent=15 // pred_region
        %p137 = scmp.lt.s32.totalorder %s15, 1
        %s138 = scalar_select %p137, %s15, 1
        %s139 = scalar_lea.vmem %s1, %s138
      $region24: #{tpu_custom_call.1} parent=15 // pred_fallthru
        _
    $region16: #{tpu_custom_call.1} parent=5 // pred_fallthru
      _
    %p140 = scmp.le.s32.totalorder 1, %s8
    %p141 = scmp.lt.s32.totalorder %s8, 3
    %p142 = pnand %p140, %p141
    %p143 = pneg %p142
    // Predicated region
    $region25: #{tpu_custom_call.1} parent=5 // pred_check
      _
    $region26: #{tpu_custom_call.1} parent=5 // pred_check_branch
      %145 = sbr.rel (%p142) target = $region28
    $region27: #{tpu_custom_call.1} parent=5 // pred_region
      %s146 = ssub.s32 %s8, 1
      %s147 = smul.u32 4, %s18
      %p148 = scmp.lt.s32.totalorder %s17, 1
      %s149 = scalar_select %p148, %s17, 1
      %p150 = scmp.lt.s32.totalorder %s147, 3
      %s151 = scalar_select %p150, %s147, 3
      %s152 = smul.addr %s149, 4
      %s153 = sadd.s32 %s151, %s152
      %s154 = smul.addr %s153, 4
      %s155 = scalar_lea.vmem %s0, %s154
      %p156 = pneg %p48
      %p157 = pneg %p45
      %p158 = scmp.lt.s32.totalorder %s17, 1
      %s159 = scalar_select %p158, %s17, 1
      %s160 = scalar_lea.vmem %s1, %s159
      %p161 = pneg %p74
      %p162 = pneg %p71
      %p163 = pneg %p102
      %p164 = pneg %p99
      %s165 = smul.u32 4, %s18
      %p166 = scmp.lt.s32.totalorder %s17, 1
      %s167 = scalar_select %p166, %s17, 1
      %p168 = scmp.lt.s32.totalorder %s165, 3
      %s169 = scalar_select %p168, %s165, 3
      %s170 = smul.addr %s167, 4
      %s171 = sadd.s32 %s169, %s170
      %s172 = smul.addr %s171, 4
      %s173 = scalar_lea.vmem %s2, %s172
      %s174 = smul.u32 4, %s18
      %p175 = scmp.lt.s32.totalorder %s17, 1
      %s176 = scalar_select %p175, %s17, 1
      %p177 = scmp.lt.s32.totalorder %s174, 3
      %s178 = scalar_select %p177, %s174, 3
      %s179 = smul.addr %s176, 4
      %s180 = sadd.s32 %s178, %s179
      %s181 = smul.addr %s180, 4
      %s182 = scalar_lea.vmem %s0, %s181
      %s183 = smul.u32 4, %s18
      %p184 = scmp.lt.s32.totalorder %s17, 1
      %s185 = scalar_select %p184, %s17, 1
      %s186 = scalar_lea.vmem %s1, %s185
      %s187 = smul.u32 4, %s18
      %p188 = scmp.lt.s32.totalorder %s17, 1
      %s189 = scalar_select %p188, %s17, 1
      %p190 = scmp.lt.s32.totalorder %s187, 3
      %s191 = scalar_select %p190, %s187, 3
      %s192 = smul.addr %s189, 4
      %s193 = sadd.s32 %s191, %s192
      %s194 = smul.addr %s193, 4
      %s195 = scalar_lea.vmem %s2, %s194
      %s196 = smul.u32 4, %s18
      %v197 = vld [vmem:[%s182] sm:$0xf]
      %v198 = vld [vmem:[%s182 + $0x4] sm:$0xf]
      %v199 = vld [vmem:[%s182 + $0x8] sm:$0xf]
      %v200 = vld [vmem:[%s182 + $0xc] sm:$0xf]
      %v201 = vld [vmem:[%s186] sm:$0x1]
      %v202 = vunpack.c.l.bf16 %v197
      %v203 = vunpack.c.l.bf16 %v198
      %v204 = vunpack.c.l.bf16 %v199
      %v205 = vunpack.c.l.bf16 %v200
      %v206 = vunpack.c.l.bf16 %v201
      %v207 = vlaneseq
      %v208 = vshrl.u32 %v207, 7
      %v209 = vsub.s32 0, %v208
      %v210 = vrot.slane %v206, %v209
      %v211 = vadd.f32 %v202, %v210
      %v212 = vadd.f32 %v203, %v210
      %v213 = vadd.f32 %v204, %v210
      %v214 = vadd.f32 %v205, %v210
      %v215 = vmax.f32 %v211, 0.0
      %v216 = vmax.f32 %v212, 0.0
      %v217 = vmax.f32 %v213, 0.0
      %v218 = vmax.f32 %v214, 0.0
      %v219 = vpack.c.bf16 %v216, %v215
      %v220 = vpack.c.bf16 %v218, %v217
      %v223 = vunpack.c.l.b16 %v219
      %v224 = vunpack.c.h.b16 %v219
      %v225 = vunpack.c.l.b16 %v220
      %v226 = vunpack.c.h.b16 %v220
      %v227 = vpack.c.b16 %v223, %v223
      %v228 = vpack.c.b16 %v224, %v224
      %v229 = vpack.c.b16 %v225, %v225
      %v230 = vpack.c.b16 %v226, %v226
      %vm235 = vcmask 60416
      %236 = vst.msk [vmem:[%s195] sm:$0xf] %vm235, %v227
      %237 = vst.msk [vmem:[%s195 + $0x4] sm:$0xf] %vm235, %v228
      %238 = vst.msk [vmem:[%s195 + $0x8] sm:$0xf] %vm235, %v229
      %239 = vst.msk [vmem:[%s195 + $0xc] sm:$0xf] %vm235, %v230
      %s240 = smul.u32 4, %s18
      %p241 = scmp.lt.s32.totalorder %s17, 1
      %s242 = scalar_select %p241, %s17, 1
      %p243 = scmp.lt.s32.totalorder %s240, 3
      %s244 = scalar_select %p243, %s240, 3
      %s245 = smul.addr %s242, 4
      %s246 = sadd.s32 %s244, %s245
      %s247 = smul.addr %s246, 4
      %s248 = scalar_lea.vmem %s2, %s247
      // Predicated region
      $region29: #{tpu_custom_call.1} parent=27 // pred_check
        %p249 = pneg %p99
      $region30: #{tpu_custom_call.1} parent=27 // pred_check_branch
        %251 = sbr.rel (%p249) target = $region32
      $region31: #{tpu_custom_call.1} parent=27 // pred_region
        %s252 = smul.u32 4, %s18
      $region32: #{tpu_custom_call.1} parent=27 // pred_fallthru
        _
    $region28: #{tpu_custom_call.1} parent=5 // pred_fallthru
      _
    %p253 = scmp.le.s32.totalorder 2, %s8
    // Predicated region
    $region33: #{tpu_custom_call.1} parent=5 // pred_check
      %p254 = pneg %p253
    $region34: #{tpu_custom_call.1} parent=5 // pred_check_branch
      %256 = sbr.rel (%p254) target = $region36
    $region35: #{tpu_custom_call.1} parent=5 // pred_region
      %s257 = ssub.s32 %s8, 2
      // Predicated region
      $region37: #{tpu_custom_call.1} parent=35 // pred_check
        %p258 = pneg %p105
      $region38: #{tpu_custom_call.1} parent=35 // pred_check_branch
        %260 = sbr.rel (%p258) target = $region40
      $region39: #{tpu_custom_call.1} parent=35 // pred_region
        %s261 = smul.u32 4, %s20
        %p262 = scmp.lt.s32.totalorder %s19, 1
        %s263 = scalar_select %p262, %s19, 1
        %p264 = scmp.lt.s32.totalorder %s261, 3
        %s265 = scalar_select %p264, %s261, 3
        %s266 = smul.addr %s263, 4
        %s267 = sadd.s32 %s265, %s266
        %s268 = smul.addr %s267, 4
        %s269 = scalar_lea.vmem %s2, %s268
      $region40: #{tpu_custom_call.1} parent=35 // pred_fallthru
        _
    $region36: #{tpu_custom_call.1} parent=5 // pred_fallthru
      _
  $region6: #{tpu_custom_call.1} parent=0 // loop_footer
    %s12 = sadd.s32 1, %s8
  $region7: #{tpu_custom_call.1} parent=0 // loop_footer_branch
    %7 = sbr.rel target = $region3
  $region8: #{tpu_custom_call.1} parent=0 // loop_exit
    _

</llo_original>
